<compile_context>
chip_gen: v7x
topology: tpu7x:2x2x1
jax: 0.10.0
libtpu: 0.0.40
codegen_flags: <defaults>
</compile_context>

<pallas_src>
import math

import jax
import jax.numpy as jnp
from jax.experimental import pallas as pl
from jax.experimental.pallas import tpu as pltpu

LN_EPS = 1e-5
ROW_TILE_MAX = 1024      # conservative: fits v5e 16 MiB default scoped VMEM / v7x 64 MiB phys
NEG_BIG = -1e30          # additive mask for padded softmax lanes


# ----------------------------- in-kernel math ------------------------------ #
def _erf(x):
    # Abramowitz & Stegun 7.1.26 rational approx, |err| < 1.5e-7.
    # NOTE: exact divide here (approx reciprocal would break the advertised
    # accuracy and shift GELU vs torch.nn.GELU); approx recip is only used for
    # softmax denominators.
    a1, a2, a3, a4, a5 = 0.254829592, -0.284496736, 1.421413741, -1.453152027, 1.061405429
    p = 0.3275911
    s = jnp.where(x < 0.0, -1.0, 1.0)
    ax = jnp.abs(x)
    t = 1.0 / (1.0 + p * ax)
    poly = ((((a5 * t + a4) * t + a3) * t + a2) * t + a1) * t
    return s * (1.0 - poly * jnp.exp(-ax * ax))


def _gelu(x):
    # matches torch.nn.GELU() default (erf-based)
    return 0.5 * x * (1.0 + _erf(x * (1.0 / math.sqrt(2.0))))


def _normalize(x):
    # LayerNorm with gamma/beta folded into the following linear (trace time).
    mean = jnp.mean(x, axis=-1, keepdims=True)
    var = jnp.mean(jnp.square(x - mean), axis=-1, keepdims=True)
    return (x - mean) * jax.lax.rsqrt(var + LN_EPS)


def _masked_softmax(logits, mask):
    # mask: 0 for valid bins, NEG_BIG for lane-pad bins
    lm = logits + mask
    m = jnp.max(lm, axis=-1, keepdims=True)
    e = jnp.exp(lm - m)
    denom = jnp.sum(e, axis=-1, keepdims=True)
    return e * pl.reciprocal(denom, approx=True)


# ------------------------------- kernels ----------------------------------- #
def _enhanced_head_kernel(x_ref, wi_ref, bi_ref, wo_ref, bo_ref, o_ref):
    """EnhancedHeadBase (LN folded into wi): norm -> Lin(d,d) -> GELU -> Lin(d,d_out_pad)."""
    x = x_ref[...].astype(jnp.float32)
    xn = _normalize(x).astype(jnp.bfloat16)
    h = _gelu(jnp.dot(xn, wi_ref[...], preferred_element_type=jnp.float32) + bi_ref[...])
    o = jnp.dot(h.astype(jnp.bfloat16), wo_ref[...],
                preferred_element_type=jnp.float32) + bo_ref[...]
    o_ref[...] = o.astype(o_ref.dtype)


def _pair_fused_kernel(x_ref, wi_ref, bi_ref, dwo_ref, dbo_ref, pwo_ref, pbo_ref,
                       mask_ref, centers_ref, tmbin_ref,
                       logits_ref, probs_ref, pae_ref, tm_ref):
    """Distogram + PAE heads fused: shared normalization, one (d,2d) matmul,
    packed lane-dense logit store, in-kernel PAE softmax/expectations."""
    d = wi_ref.shape[0]
    x = x_ref[...].astype(jnp.float32)
    xn = _normalize(x).astype(jnp.bfloat16)
    h = _gelu(jnp.dot(xn, wi_ref[...], preferred_element_type=jnp.float32) + bi_ref[...])
    h = h.astype(jnp.bfloat16)

    od = jnp.dot(h[:, :d], dwo_ref[...], preferred_element_type=jnp.float32) + dbo_ref[...]
    op = jnp.dot(h[:, d:], pwo_ref[...], preferred_element_type=jnp.float32) + pbo_ref[...]

    # single lane-dense store of both logit sets
    logits_ref[...] = jnp.concatenate([od, op], axis=-1).astype(logits_ref.dtype)

    # fused softmax + expectations (padded lanes masked out); probs stored bf16
    probs = _masked_softmax(op, mask_ref[...])
    probs_ref[...] = probs.astype(probs_ref.dtype)
    pae_ref[...] = jnp.sum(probs * centers_ref[...], axis=-1, keepdims=True).astype(pae_ref.dtype)
    tm_ref[...] = jnp.sum(probs * tmbin_ref[...], axis=-1, keepdims=True).astype(tm_ref.dtype)


def _plddt_head_kernel(x_ref, w1_ref, b1_ref, w2_ref, b2_ref, w3_ref, b3_ref,
                       mask_ref, centers_ref, o_ref, lddt_ref):
    """PredictedLDDTHead (LN folded into w1): norm -> Lin1 -> GELU -> Lin2 -> GELU -> Lin3,
    plus fused expected-lDDT."""
    x = x_ref[...].astype(jnp.float32)
    xn = _normalize(x).astype(jnp.bfloat16)
    h = _gelu(jnp.dot(xn, w1_ref[...], preferred_element_type=jnp.float32) + b1_ref[...])
    h = _gelu(jnp.dot(h.astype(jnp.bfloat16), w2_ref[...],
                      preferred_element_type=jnp.float32) + b2_ref[...])
    o = jnp.dot(h.astype(jnp.bfloat16), w3_ref[...],
                preferred_element_type=jnp.float32) + b3_ref[...]
    o_ref[...] = o.astype(o_ref.dtype)
    probs = _masked_softmax(o, mask_ref[...])
    lddt_ref[...] = (jnp.sum(probs * centers_ref[...], axis=-1, keepdims=True) * 100.0
                     ).astype(lddt_ref.dtype)


# ------------------------------ call helpers -------------------------------- #
def _round_up(n, m):
    return ((n + m - 1) // m) * m


def _pad_last(a, to):
    return a if a.shape[-1] == to else jnp.pad(a, ((0, 0), (0, to - a.shape[-1])))


def _pad_first(a, to):
    return a if a.shape[0] == to else jnp.pad(a, ((0, to - a.shape[0]), (0, 0)))


def _pick_row_tile(r):
    """512-multiple tiles (bf16 (16,128) layout), even step count when possible (v7x 2 TCs)."""
    if r <= ROW_TILE_MAX:
        return r                                  # single full block
    for tile in (ROW_TILE_MAX, ROW_TILE_MAX // 2):
        if (-(-r // tile)) % 2 == 0:
            return tile
    return ROW_TILE_MAX


def _whole_spec(p):
    # constant index_map -> DMA once, stays VMEM resident across grid steps
    return pl.BlockSpec(p.shape, lambda i, _nd=p.ndim: (0,) * _nd)


def _row_spec(tile, width):
    return pl.BlockSpec((tile, width), lambda i: (i, 0))


def _run_row_kernel(kernel, x2d, params, out_shapes, cost_estimate=None):
    """Run `kernel` over row tiles of a (R, D) view; weights/constants are whole blocks.

    NOTE: the ragged tail block (when tile does not divide R) only flows through
    row-local math (LN / matmul / softmax along axis=-1); its out-of-bounds
    writes are discarded by Pallas, so garbage rows never contaminate results.
    """
    R, D = x2d.shape
    tile = _pick_row_tile(R)
    grid = (pl.cdiv(R, tile),)
    in_specs = [_row_spec(tile, D)] + [_whole_spec(p) for p in params]
    out_specs = tuple(_row_spec(tile, s.shape[-1]) for s in out_shapes)
    return pl.pallas_call(
        kernel,
        out_shape=tuple(out_shapes),
        grid=grid,
        in_specs=in_specs,
        out_specs=out_specs,
        compiler_params=pltpu.CompilerParams(dimension_semantics=("parallel",)),
        cost_estimate=cost_estimate,
    )(x2d, *params)


def _fold_ln(g, b, w, bias):
    """Fold LayerNorm gamma/beta into the following linear: LN(x)@W + c
       == xn @ (diag(g) W) + (b @ W + c), with xn = (x-mean)*rsqrt(var+eps)."""
    return g.reshape(-1, 1) * w, bias + b @ w


def _bin_centers(boundaries):
    step = boundaries[1] - boundaries[0]
    centers = boundaries + step / 2.0
    return jnp.concatenate([centers, centers[-1:] + step], axis=0)


# ----------------------------- head wrappers ------------------------------- #
def enhanced_head_apply(x, p):
    """Single EnhancedHeadBase (masked-MSA / experimentally-resolved)."""
    d_in = x.shape[-1]
    d_out = p["w_out"].shape[-1]
    d_out_pad = _round_up(d_out, 128)
    lead = x.shape[:-1]
    x2d = x.reshape(-1, d_in).astype(jnp.bfloat16)       # halve HBM read of input

    wi, bi = _fold_ln(p["ln_g"], p["ln_b"], p["w_in"], p["b_in"])
    params = [wi.astype(jnp.bfloat16), bi.astype(jnp.float32),
              _pad_last(p["w_out"], d_out_pad).astype(jnp.bfloat16),
              _pad_last(p["b_out"], d_out_pad).astype(jnp.float32)]
    (out,) = _run_row_kernel(
        _enhanced_head_kernel, x2d, params,
        [jax.ShapeDtypeStruct((x2d.shape[0], d_out_pad), x.dtype)])
    return out[:, :d_out].reshape(*lead, d_out)


def plddt_head_apply(s, p, num_bins):
    """PredictedLDDTHead; also returns the fused expected-lDDT per row."""
    d_in = s.shape[-1]
    d_hid = p["w1"].shape[-1]
    dh_pad = _round_up(d_hid, 128)
    nb_pad = _round_up(num_bins, 128)
    lead = s.shape[:-1]
    x2d = s.reshape(-1, d_in).astype(jnp.bfloat16)
    R = x2d.shape[0]

    w1, b1 = _fold_ln(p["ln_g"], p["ln_b"], p["w1"], p["b1"])
    w1 = _pad_last(w1, dh_pad).astype(jnp.bfloat16)
    b1 = _pad_last(b1, dh_pad).astype(jnp.float32)
    w2 = _pad_last(_pad_first(p["w2"], dh_pad), dh_pad).astype(jnp.bfloat16)
    b2 = _pad_last(p["b2"], dh_pad).astype(jnp.float32)
    w3 = _pad_last(_pad_first(p["w3"], dh_pad), nb_pad).astype(jnp.bfloat16)
    b3 = _pad_last(p["b3"], nb_pad).astype(jnp.float32)

    bw = 1.0 / num_bins
    centers = ((jnp.arange(num_bins, dtype=jnp.float32) + 0.5) * bw).reshape(1, num_bins)
    centers = _pad_last(centers, nb_pad)
    mask = jnp.full((1, nb_pad), NEG_BIG, jnp.float32).at[:, :num_bins].set(0.0)

    params = [w1, b1, w2, b2, w3, b3, mask, centers]
    logits, lddt = _run_row_kernel(
        _plddt_head_kernel, x2d, params,
        [jax.ShapeDtypeStruct((R, nb_pad), s.dtype),
         jax.ShapeDtypeStruct((R, 1), jnp.float32)])
    logits = logits[:, :num_bins].reshape(*lead, num_bins)
    plddt = lddt[:, 0].reshape(lead)
    return logits, plddt


def pair_heads_apply(pair, p_dist, p_pae, pae_cfg):
    """Fused Distogram + PAE heads over the (.., N, N, d_pair) pair tensor.

    Returns (disto_logits, pae_logits, pae_probs[bf16], pae_expected, tm_term, max_pae).
    The pair tensor is streamed from HBM once (as bf16); PAE softmax / expected
    aligned error / pTM per-pair term are computed while the logits are in VMEM.
    """
    d_in = pair.shape[-1]
    n_res = pair.shape[-2]
    lead = pair.shape[:-1]
    x2d = pair.reshape(-1, d_in).astype(jnp.bfloat16)
    R = x2d.shape[0]

    nb_d = p_dist["w_out"].shape[-1]
    nb_p = p_pae["w_out"].shape[-1]
    nb_pack = _round_up(nb_d + nb_p, 128)   # packed lane-dense logits width
    nb_p_pad = nb_pack - nb_d               # PAE slot width (includes lane padding)

    # fold each head's LN into its linear_in; concatenate -> one (d, 2d) matmul
    dwi, dbi = _fold_ln(p_dist["ln_g"], p_dist["ln_b"], p_dist["w_in"], p_dist["b_in"])
    pwi, pbi = _fold_ln(p_pae["ln_g"], p_pae["ln_b"], p_pae["w_in"], p_pae["b_in"])
    wi = jnp.concatenate([dwi, pwi], axis=-1).astype(jnp.bfloat16)   # (d, 2d)
    bi = jnp.concatenate([dbi, pbi], axis=-1).astype(jnp.float32)    # (1, 2d)

    # PAE bin centers / TM per-bin terms (trace-time constants)
    max_bin = pae_cfg.get("max_bin", 31)
    boundaries = jnp.linspace(0.0, float(max_bin), nb_p - 1)
    centers = _bin_centers(boundaries)                               # (nb_p,)
    clipped = max(n_res, 19)
    d0 = 1.24 * (clipped - 15.0) ** (1.0 / 3.0) - 1.8
    tm_per_bin = 1.0 / (1.0 + jnp.square(centers) / (d0 * d0))

    centers_p = _pad_last(centers.reshape(1, nb_p).astype(jnp.float32), nb_p_pad)
    tmbin_p = _pad_last(tm_per_bin.reshape(1, nb_p).astype(jnp.float32), nb_p_pad)
    mask_p = jnp.full((1, nb_p_pad), NEG_BIG, jnp.float32).at[:, :nb_p].set(0.0)

    params = [
        wi, bi,
        p_dist["w_out"].astype(jnp.bfloat16), p_dist["b_out"].astype(jnp.float32),
        _pad_last(p_pae["w_out"], nb_p_pad).astype(jnp.bfloat16),
        _pad_last(p_pae["b_out"], nb_p_pad).astype(jnp.float32),
        mask_p, centers_p, tmbin_p,
    ]

    # advisory cost estimate so XLA overlaps the small heads with this pass
    out_bytes = jnp.dtype(pair.dtype).itemsize
    flops = 2 * R * d_in * (2 * d_in + nb_d + nb_p_pad)
    transcend = R * (2 * d_in + nb_p_pad)
    bytes_acc = (R * d_in * 2 + R * nb_pack * out_bytes + R * nb_p_pad * 2 + R * 8
                 + sum(q.size * jnp.dtype(q.dtype).itemsize for q in params))
    cost = pl.CostEstimate(flops=flops, transcendentals=transcend,
                           bytes_accessed=bytes_acc)

    packed, probs, pae_e, tm_e = _run_row_kernel(
        _pair_fused_kernel, x2d, params,
        [jax.ShapeDtypeStruct((R, nb_pack), pair.dtype),
         jax.ShapeDtypeStruct((R, nb_p_pad), jnp.bfloat16),
         jax.ShapeDtypeStruct((R, 1), jnp.float32),
         jax.ShapeDtypeStruct((R, 1), jnp.float32)],
        cost_estimate=cost)

    disto = packed[:, :nb_d].reshape(*lead, nb_d)
    pae_logits = packed[:, nb_d:nb_d + nb_p].reshape(*lead, nb_p)
    probs = probs[:, :nb_p].reshape(*lead, nb_p)
    pae = pae_e[:, 0].reshape(lead)
    tm_term = tm_e[:, 0].reshape(lead)
    return disto, pae_logits, probs, pae, tm_term, centers[-1]


# --------------------- pTM summary (tiny (N,N) JAX glue) --------------------- #
def tm_score_from_term(tm_term, interface=False, asym_id=None):
    num_res = tm_term.shape[-1]
    pair_mask = jnp.ones((num_res, num_res), dtype=jnp.float32)
    if interface:
        pair_mask = pair_mask * (asym_id[..., :, None] != asym_id[..., None, :]).astype(jnp.float32)
    tm = tm_term * pair_mask
    denom = 1e-8 + jnp.sum(pair_mask, axis=-1, keepdims=True)
    per_alignment = jnp.sum(tm * (pair_mask / denom), axis=-1)
    return jnp.max(per_alignment, axis=-1)


# ------------------------- AuxiliaryHeads forward --------------------------- #
def auxiliary_heads_forward(params, outputs, config):
    aux = {}

    # pLDDT head: logits + expected lDDT fused in one kernel pass
    plddt_logits, plddt = plddt_head_apply(
        outputs["sm"]["single"], params["plddt"], config["plddt"]["num_bins"])
    aux["plddt_logits"] = plddt_logits
    aux["plddt"] = jax.lax.stop_gradient(plddt)          # original uses detached logits

    # distogram + PAE fused: one pass over the pair tensor
    pae_cfg = config["pae"]
    disto, pae_logits, probs, pae, tm_term, max_pae = pair_heads_apply(
        outputs["pair"], params["distogram"], params["pae"], pae_cfg)
    aux["distogram_logits"] = disto + jnp.swapaxes(disto, -2, -3)
    aux["pae_logits"] = pae_logits
    aux["aligned_confidence_probs"] = jax.lax.stop_gradient(probs)   # bf16 (confidence only)
    aux["predicted_aligned_error"] = jax.lax.stop_gradient(pae)
    aux["max_predicted_aligned_error"] = max_pae
    tm_term = jax.lax.stop_gradient(tm_term)
    aux["ptm"] = tm_score_from_term(tm_term, interface=False)
    iptm_weight = pae_cfg.get("iptm_weight", 0.0)
    if iptm_weight > 0.0:
        aux["iptm"] = tm_score_from_term(tm_term, interface=True, asym_id=outputs["asym_id"])
        aux["iptm+ptm"] = iptm_weight * aux["iptm"] + (1.0 - iptm_weight) * aux["ptm"]

    # masked MSA / experimentally resolved heads
    aux["masked_msa_logits"] = enhanced_head_apply(outputs["msa"], params["masked_msa"])
    aux["experimentally_resolved_logits"] = enhanced_head_apply(
        outputs["single"], params["experimentally_resolved"])
    return aux


# --------------------------- deterministic params --------------------------- #
def init_enhanced_head(key, d_in, d_out):
    k1, k2 = jax.random.split(key)
    return {
        "ln_g": jnp.ones((1, d_in), jnp.float32),
        "ln_b": jnp.zeros((1, d_in), jnp.float32),
        "w_in": jax.random.normal(k1, (d_in, d_in), jnp.float32) * (2.0 / d_in) ** 0.5,
        "b_in": jnp.zeros((1, d_in), jnp.float32),
        "w_out": jax.random.normal(k2, (d_in, d_out), jnp.float32) * 0.02,
        "b_out": jnp.zeros((1, d_out), jnp.float32),
    }


def init_plddt_head(key, d_in, d_hid, num_bins):
    k1, k2, k3 = jax.random.split(key, 3)
    return {
        "ln_g": jnp.ones((1, d_in), jnp.float32),
        "ln_b": jnp.zeros((1, d_in), jnp.float32),
        "w1": jax.random.normal(k1, (d_in, d_hid), jnp.float32) * (2.0 / d_in) ** 0.5,
        "b1": jnp.zeros((1, d_hid), jnp.float32),
        "w2": jax.random.normal(k2, (d_hid, d_hid), jnp.float32) * (2.0 / d_hid) ** 0.5,
        "b2": jnp.zeros((1, d_hid), jnp.float32),
        "w3": jax.random.normal(k3, (d_hid, num_bins), jnp.float32) * 0.02,
        "b3": jnp.zeros((1, num_bins), jnp.float32),
    }


if __name__ == "__main__":
    key = jax.random.PRNGKey(0)
    keys = jax.random.split(key, 10)

    n_res, n_seq = 16, 8
    d_pair, d_msa, d_single, d_sm_single, d_hid = 32, 32, 32, 32, 16

    config = {
        "plddt": {"num_bins": 50, "d_in": d_sm_single, "d_hid": d_hid},
        "distogram": {"num_bins": 64},
        "masked_msa": {"d_out": 23},
        "experimentally_resolved": {"d_out": 37},
        "pae": {"num_bins": 64, "max_bin": 31, "iptm_weight": 0.0},
    }

    params = {
        "plddt": init_plddt_head(keys[0], d_sm_single, d_hid, config["plddt"]["num_bins"]),
        "distogram": init_enhanced_head(keys[1], d_pair, config["distogram"]["num_bins"]),
        "masked_msa": init_enhanced_head(keys[2], d_msa, config["masked_msa"]["d_out"]),
        "experimentally_resolved": init_enhanced_head(
            keys[3], d_single, config["experimentally_resolved"]["d_out"]),
        "pae": init_enhanced_head(keys[4], d_pair, config["pae"]["num_bins"]),
    }

    outputs = {
        "sm": {"single": jax.random.normal(keys[5], (n_res, d_sm_single), jnp.float32)},
        "pair": jax.random.normal(keys[6], (n_res, n_res, d_pair), jnp.float32),
        "msa": jax.random.normal(keys[7], (n_seq, n_res, d_msa), jnp.float32),
        "single": jax.random.normal(keys[8], (n_res, d_single), jnp.float32),
        "asym_id": jnp.zeros((n_res,), jnp.int32),
    }

    aux = auxiliary_heads_forward(params, outputs, config)
    jax.block_until_ready(aux)
    print("KERNEL_OK")
</pallas_src>

<mosaic_0001>
module attributes {stable_mosaic.version = 11 : i64} {
  func.func @_plddt_head_kernel(%arg0: i32, %arg1: memref<16x32xbf16, #tpu.memory_space<vmem>>, %arg2: memref<32x128xbf16, #tpu.memory_space<vmem>>, %arg3: memref<1x128xf32, #tpu.memory_space<vmem>>, %arg4: memref<128x128xbf16, #tpu.memory_space<vmem>>, %arg5: memref<1x128xf32, #tpu.memory_space<vmem>>, %arg6: memref<128x128xbf16, #tpu.memory_space<vmem>>, %arg7: memref<1x128xf32, #tpu.memory_space<vmem>>, %arg8: memref<1x128xf32, #tpu.memory_space<vmem>>, %arg9: memref<1x128xf32, #tpu.memory_space<vmem>>, %arg10: memref<16x128xf32, #tpu.memory_space<vmem>>, %arg11: memref<16x1xf32, #tpu.memory_space<vmem>>) attributes {dimension_semantics = [#tpu.dimension_semantics<parallel>], iteration_bounds = array<i64: 1>, scalar_prefetch = 0 : i64, scratch_operands = 0 : i64, tpu.core_type = #tpu.core_type<tc>, window_params = [{transform_indices = @transform_0, window_bounds = array<i64: 16, 32>}, {pipeline_mode = #tpu.pipeline_mode<synchronous>, transform_indices = @transform_1, window_bounds = array<i64: 32, 128>}, {pipeline_mode = #tpu.pipeline_mode<synchronous>, transform_indices = @transform_2, window_bounds = array<i64: 1, 128>}, {pipeline_mode = #tpu.pipeline_mode<synchronous>, transform_indices = @transform_3, window_bounds = array<i64: 128, 128>}, {pipeline_mode = #tpu.pipeline_mode<synchronous>, transform_indices = @transform_4, window_bounds = array<i64: 1, 128>}, {pipeline_mode = #tpu.pipeline_mode<synchronous>, transform_indices = @transform_5, window_bounds = array<i64: 128, 128>}, {pipeline_mode = #tpu.pipeline_mode<synchronous>, transform_indices = @transform_6, window_bounds = array<i64: 1, 128>}, {pipeline_mode = #tpu.pipeline_mode<synchronous>, transform_indices = @transform_7, window_bounds = array<i64: 1, 128>}, {pipeline_mode = #tpu.pipeline_mode<synchronous>, transform_indices = @transform_8, window_bounds = array<i64: 1, 128>}, {transform_indices = @transform_9, window_bounds = array<i64: 16, 128>}, {transform_indices = @transform_10, window_bounds = array<i64: 16, 1>}]} {
    %c0 = arith.constant 0 : index
    %c0_0 = arith.constant 0 : index
    %0 = vector.load %arg1[%c0, %c0_0] : memref<16x32xbf16, #tpu.memory_space<vmem>>, vector<16x32xbf16>
    %1 = arith.extf %0 : vector<16x32xbf16> to vector<16x32xf32>
    %cst = arith.constant dense<0.000000e+00> : vector<16xf32>
    %2 = vector.multi_reduction <add>, %1, %cst [1] : vector<16x32xf32> to vector<16xf32>
    %3 = vector.shape_cast %2 : vector<16xf32> to vector<16x1xf32>
    %cst_1 = arith.constant 3.200000e+01 : f32
    %4 = vector.broadcast %cst_1 : f32 to vector<16x1xf32>
    %5 = arith.divf %3, %4 : vector<16x1xf32>
    %6 = vector.broadcast %5 : vector<16x1xf32> to vector<16x32xf32>
    %7 = arith.subf %1, %6 : vector<16x32xf32>
    %8 = arith.mulf %7, %7 : vector<16x32xf32>
    %cst_2 = arith.constant dense<0.000000e+00> : vector<16xf32>
    %9 = vector.multi_reduction <add>, %8, %cst_2 [1] : vector<16x32xf32> to vector<16xf32>
    %10 = vector.shape_cast %9 : vector<16xf32> to vector<16x1xf32>
    %cst_3 = arith.constant 3.200000e+01 : f32
    %11 = vector.broadcast %cst_3 : f32 to vector<16x1xf32>
    %12 = arith.divf %10, %11 : vector<16x1xf32>
    %13 = vector.broadcast %5 : vector<16x1xf32> to vector<16x32xf32>
    %14 = arith.subf %1, %13 : vector<16x32xf32>
    %cst_4 = arith.constant 9.99999974E-6 : f32
    %15 = vector.broadcast %cst_4 : f32 to vector<16x1xf32>
    %16 = arith.addf %12, %15 : vector<16x1xf32>
    %17 = math.rsqrt %16 : vector<16x1xf32>
    %18 = vector.broadcast %17 : vector<16x1xf32> to vector<16x32xf32>
    %19 = arith.mulf %14, %18 : vector<16x32xf32>
    %20 = arith.truncf %19 : vector<16x32xf32> to vector<16x32xbf16>
    %c0_5 = arith.constant 0 : index
    %c0_6 = arith.constant 0 : index
    %21 = vector.load %arg2[%c0_5, %c0_6] : memref<32x128xbf16, #tpu.memory_space<vmem>>, vector<32x128xbf16>
    %cst_7 = arith.constant dense<0.000000e+00> : vector<16x128xf32>
    %22 = tpu.matmul %20, %21, %cst_7 {dimension_numbers = #tpu.dot_dimension_numbers<[1], [0], [0], [1], [0, 0, 1, 1], [], []>} : vector<16x32xbf16>, vector<32x128xbf16>, vector<16x128xf32> -> vector<16x128xf32>
    %c0_8 = arith.constant 0 : index
    %c0_9 = arith.constant 0 : index
    %23 = vector.load %arg3[%c0_8, %c0_9] : memref<1x128xf32, #tpu.memory_space<vmem>>, vector<1x128xf32>
    %24 = vector.broadcast %23 : vector<1x128xf32> to vector<16x128xf32>
    %25 = arith.addf %22, %24 : vector<16x128xf32>
    %cst_10 = arith.constant 5.000000e-01 : f32
    %26 = vector.broadcast %cst_10 : f32 to vector<16x128xf32>
    %27 = arith.mulf %26, %25 : vector<16x128xf32>
    %cst_11 = arith.constant 0.707106769 : f32
    %28 = vector.broadcast %cst_11 : f32 to vector<16x128xf32>
    %29 = arith.mulf %25, %28 : vector<16x128xf32>
    %cst_12 = arith.constant 0.000000e+00 : f32
    %30 = vector.broadcast %cst_12 : f32 to vector<16x128xf32>
    %31 = arith.cmpf olt, %29, %30 : vector<16x128xf32>
    %cst_13 = arith.constant -1.000000e+00 : f32
    %cst_14 = arith.constant 1.000000e+00 : f32
    %32 = vector.broadcast %cst_13 : f32 to vector<16x128xf32>
    %33 = vector.broadcast %cst_14 : f32 to vector<16x128xf32>
    %34 = arith.select %31, %32, %33 : vector<16x128xi1>, vector<16x128xf32>
    %35 = math.absf %29 : vector<16x128xf32>
    %cst_15 = arith.constant 0.327591091 : f32
    %36 = vector.broadcast %cst_15 : f32 to vector<16x128xf32>
    %37 = arith.mulf %36, %35 : vector<16x128xf32>
    %cst_16 = arith.constant 1.000000e+00 : f32
    %38 = vector.broadcast %cst_16 : f32 to vector<16x128xf32>
    %39 = arith.addf %38, %37 : vector<16x128xf32>
    %cst_17 = arith.constant 1.000000e+00 : f32
    %40 = vector.broadcast %cst_17 : f32 to vector<16x128xf32>
    %41 = arith.divf %40, %39 : vector<16x128xf32>
    %cst_18 = arith.constant 1.06140542 : f32
    %42 = vector.broadcast %cst_18 : f32 to vector<16x128xf32>
    %43 = arith.mulf %42, %41 : vector<16x128xf32>
    %cst_19 = arith.constant -1.45315206 : f32
    %44 = vector.broadcast %cst_19 : f32 to vector<16x128xf32>
    %45 = arith.addf %43, %44 : vector<16x128xf32>
    %46 = arith.mulf %45, %41 : vector<16x128xf32>
    %cst_20 = arith.constant 1.42141378 : f32
    %47 = vector.broadcast %cst_20 : f32 to vector<16x128xf32>
    %48 = arith.addf %46, %47 : vector<16x128xf32>
    %49 = arith.mulf %48, %41 : vector<16x128xf32>
    %cst_21 = arith.constant -0.284496725 : f32
    %50 = vector.broadcast %cst_21 : f32 to vector<16x128xf32>
    %51 = arith.addf %49, %50 : vector<16x128xf32>
    %52 = arith.mulf %51, %41 : vector<16x128xf32>
    %cst_22 = arith.constant 0.254829586 : f32
    %53 = vector.broadcast %cst_22 : f32 to vector<16x128xf32>
    %54 = arith.addf %52, %53 : vector<16x128xf32>
    %55 = arith.mulf %54, %41 : vector<16x128xf32>
    %cst_23 = arith.constant 0.000000e+00 : f32
    %56 = vector.broadcast %cst_23 : f32 to vector<16x128xf32>
    %57 = arith.subf %56, %35 : vector<16x128xf32>
    %58 = arith.mulf %57, %35 : vector<16x128xf32>
    %59 = math.exp %58 : vector<16x128xf32>
    %60 = arith.mulf %55, %59 : vector<16x128xf32>
    %cst_24 = arith.constant 1.000000e+00 : f32
    %61 = vector.broadcast %cst_24 : f32 to vector<16x128xf32>
    %62 = arith.subf %61, %60 : vector<16x128xf32>
    %63 = arith.mulf %34, %62 : vector<16x128xf32>
    %cst_25 = arith.constant 1.000000e+00 : f32
    %64 = vector.broadcast %cst_25 : f32 to vector<16x128xf32>
    %65 = arith.addf %64, %63 : vector<16x128xf32>
    %66 = arith.mulf %27, %65 : vector<16x128xf32>
    %67 = arith.truncf %66 : vector<16x128xf32> to vector<16x128xbf16>
    %c0_26 = arith.constant 0 : index
    %c0_27 = arith.constant 0 : index
    %68 = vector.load %arg4[%c0_26, %c0_27] : memref<128x128xbf16, #tpu.memory_space<vmem>>, vector<128x128xbf16>
    %cst_28 = arith.constant dense<0.000000e+00> : vector<16x128xf32>
    %69 = tpu.matmul %67, %68, %cst_28 {dimension_numbers = #tpu.dot_dimension_numbers<[1], [0], [0], [1], [0, 0, 1, 1], [], []>} : vector<16x128xbf16>, vector<128x128xbf16>, vector<16x128xf32> -> vector<16x128xf32>
    %c0_29 = arith.constant 0 : index
    %c0_30 = arith.constant 0 : index
    %70 = vector.load %arg5[%c0_29, %c0_30] : memref<1x128xf32, #tpu.memory_space<vmem>>, vector<1x128xf32>
    %71 = vector.broadcast %70 : vector<1x128xf32> to vector<16x128xf32>
    %72 = arith.addf %69, %71 : vector<16x128xf32>
    %cst_31 = arith.constant 5.000000e-01 : f32
    %73 = vector.broadcast %cst_31 : f32 to vector<16x128xf32>
    %74 = arith.mulf %73, %72 : vector<16x128xf32>
    %cst_32 = arith.constant 0.707106769 : f32
    %75 = vector.broadcast %cst_32 : f32 to vector<16x128xf32>
    %76 = arith.mulf %72, %75 : vector<16x128xf32>
    %cst_33 = arith.constant 0.000000e+00 : f32
    %77 = vector.broadcast %cst_33 : f32 to vector<16x128xf32>
    %78 = arith.cmpf olt, %76, %77 : vector<16x128xf32>
    %cst_34 = arith.constant -1.000000e+00 : f32
    %cst_35 = arith.constant 1.000000e+00 : f32
    %79 = vector.broadcast %cst_34 : f32 to vector<16x128xf32>
    %80 = vector.broadcast %cst_35 : f32 to vector<16x128xf32>
    %81 = arith.select %78, %79, %80 : vector<16x128xi1>, vector<16x128xf32>
    %82 = math.absf %76 : vector<16x128xf32>
    %cst_36 = arith.constant 0.327591091 : f32
    %83 = vector.broadcast %cst_36 : f32 to vector<16x128xf32>
    %84 = arith.mulf %83, %82 : vector<16x128xf32>
    %cst_37 = arith.constant 1.000000e+00 : f32
    %85 = vector.broadcast %cst_37 : f32 to vector<16x128xf32>
    %86 = arith.addf %85, %84 : vector<16x128xf32>
    %cst_38 = arith.constant 1.000000e+00 : f32
    %87 = vector.broadcast %cst_38 : f32 to vector<16x128xf32>
    %88 = arith.divf %87, %86 : vector<16x128xf32>
    %cst_39 = arith.constant 1.06140542 : f32
    %89 = vector.broadcast %cst_39 : f32 to vector<16x128xf32>
    %90 = arith.mulf %89, %88 : vector<16x128xf32>
    %cst_40 = arith.constant -1.45315206 : f32
    %91 = vector.broadcast %cst_40 : f32 to vector<16x128xf32>
    %92 = arith.addf %90, %91 : vector<16x128xf32>
    %93 = arith.mulf %92, %88 : vector<16x128xf32>
    %cst_41 = arith.constant 1.42141378 : f32
    %94 = vector.broadcast %cst_41 : f32 to vector<16x128xf32>
    %95 = arith.addf %93, %94 : vector<16x128xf32>
    %96 = arith.mulf %95, %88 : vector<16x128xf32>
    %cst_42 = arith.constant -0.284496725 : f32
    %97 = vector.broadcast %cst_42 : f32 to vector<16x128xf32>
    %98 = arith.addf %96, %97 : vector<16x128xf32>
    %99 = arith.mulf %98, %88 : vector<16x128xf32>
    %cst_43 = arith.constant 0.254829586 : f32
    %100 = vector.broadcast %cst_43 : f32 to vector<16x128xf32>
    %101 = arith.addf %99, %100 : vector<16x128xf32>
    %102 = arith.mulf %101, %88 : vector<16x128xf32>
    %cst_44 = arith.constant 0.000000e+00 : f32
    %103 = vector.broadcast %cst_44 : f32 to vector<16x128xf32>
    %104 = arith.subf %103, %82 : vector<16x128xf32>
    %105 = arith.mulf %104, %82 : vector<16x128xf32>
    %106 = math.exp %105 : vector<16x128xf32>
    %107 = arith.mulf %102, %106 : vector<16x128xf32>
    %cst_45 = arith.constant 1.000000e+00 : f32
    %108 = vector.broadcast %cst_45 : f32 to vector<16x128xf32>
    %109 = arith.subf %108, %107 : vector<16x128xf32>
    %110 = arith.mulf %81, %109 : vector<16x128xf32>
    %cst_46 = arith.constant 1.000000e+00 : f32
    %111 = vector.broadcast %cst_46 : f32 to vector<16x128xf32>
    %112 = arith.addf %111, %110 : vector<16x128xf32>
    %113 = arith.mulf %74, %112 : vector<16x128xf32>
    %114 = arith.truncf %113 : vector<16x128xf32> to vector<16x128xbf16>
    %c0_47 = arith.constant 0 : index
    %c0_48 = arith.constant 0 : index
    %115 = vector.load %arg6[%c0_47, %c0_48] : memref<128x128xbf16, #tpu.memory_space<vmem>>, vector<128x128xbf16>
    %cst_49 = arith.constant dense<0.000000e+00> : vector<16x128xf32>
    %116 = tpu.matmul %114, %115, %cst_49 {dimension_numbers = #tpu.dot_dimension_numbers<[1], [0], [0], [1], [0, 0, 1, 1], [], []>} : vector<16x128xbf16>, vector<128x128xbf16>, vector<16x128xf32> -> vector<16x128xf32>
    %c0_50 = arith.constant 0 : index
    %c0_51 = arith.constant 0 : index
    %117 = vector.load %arg7[%c0_50, %c0_51] : memref<1x128xf32, #tpu.memory_space<vmem>>, vector<1x128xf32>
    %118 = vector.broadcast %117 : vector<1x128xf32> to vector<16x128xf32>
    %119 = arith.addf %116, %118 : vector<16x128xf32>
    %c0_52 = arith.constant 0 : index
    %c0_53 = arith.constant 0 : index
    %120 = vector.load %arg10[%c0_52, %c0_53] : memref<16x128xf32, #tpu.memory_space<vmem>>, vector<16x128xf32>
    tpu.vector_store %arg10[%c0_52, %c0_53], %119 {strides = array<i32>} : memref<16x128xf32, #tpu.memory_space<vmem>>, vector<16x128xf32>,
    %c0_54 = arith.constant 0 : index
    %c0_55 = arith.constant 0 : index
    %121 = vector.load %arg8[%c0_54, %c0_55] : memref<1x128xf32, #tpu.memory_space<vmem>>, vector<1x128xf32>
    %122 = vector.broadcast %121 : vector<1x128xf32> to vector<16x128xf32>
    %123 = arith.addf %119, %122 : vector<16x128xf32>
    %cst_56 = arith.constant dense<0xFF800000> : vector<16xf32>
    %124 = vector.multi_reduction <maximumf>, %123, %cst_56 [1] : vector<16x128xf32> to vector<16xf32>
    %125 = vector.shape_cast %124 : vector<16xf32> to vector<16x1xf32>
    %126 = vector.broadcast %125 : vector<16x1xf32> to vector<16x128xf32>
    %127 = arith.subf %123, %126 : vector<16x128xf32>
    %128 = math.exp %127 : vector<16x128xf32>
    %cst_57 = arith.constant dense<0.000000e+00> : vector<16xf32>
    %129 = vector.multi_reduction <add>, %128, %cst_57 [1] : vector<16x128xf32> to vector<16xf32>
    %130 = vector.shape_cast %129 : vector<16xf32> to vector<16x1xf32>
    %131 = tpu.reciprocal %130 {approx = true} : vector<16x1xf32> -> vector<16x1xf32>
    %132 = vector.broadcast %131 : vector<16x1xf32> to vector<16x128xf32>
    %133 = arith.mulf %128, %132 : vector<16x128xf32>
    %c0_58 = arith.constant 0 : index
    %c0_59 = arith.constant 0 : index
    %134 = vector.load %arg9[%c0_58, %c0_59] : memref<1x128xf32, #tpu.memory_space<vmem>>, vector<1x128xf32>
    %135 = vector.broadcast %134 : vector<1x128xf32> to vector<16x128xf32>
    %136 = arith.mulf %133, %135 : vector<16x128xf32>
    %cst_60 = arith.constant dense<0.000000e+00> : vector<16xf32>
    %137 = vector.multi_reduction <add>, %136, %cst_60 [1] : vector<16x128xf32> to vector<16xf32>
    %138 = vector.shape_cast %137 : vector<16xf32> to vector<16x1xf32>
    %cst_61 = arith.constant 1.000000e+02 : f32
    %139 = vector.broadcast %cst_61 : f32 to vector<16x1xf32>
    %140 = arith.mulf %138, %139 : vector<16x1xf32>
    %c0_62 = arith.constant 0 : index
    %c0_63 = arith.constant 0 : index
    %141 = vector.load %arg11[%c0_62, %c0_63] : memref<16x1xf32, #tpu.memory_space<vmem>>, vector<16x1xf32>
    tpu.vector_store %arg11[%c0_62, %c0_63], %140 {strides = array<i32>} : memref<16x1xf32, #tpu.memory_space<vmem>>, vector<16x1xf32>,
    return
  }
  func.func @transform_0(%arg0: i32) -> (i32, i32) {
    %c0_i32 = arith.constant 0 : i32
    %c0_i32_0 = arith.constant 0 : i32
    return %arg0, %c0_i32 : i32, i32
  }
  func.func @transform_1(%arg0: i32) -> (i32, i32) {
    %c0_i32 = arith.constant 0 : i32
    %c0_i32_0 = arith.constant 0 : i32
    %c0_i32_1 = arith.constant 0 : i32
    return %c0_i32, %c0_i32_0 : i32, i32
  }
  func.func @transform_2(%arg0: i32) -> (i32, i32) {
    %c0_i32 = arith.constant 0 : i32
    %c0_i32_0 = arith.constant 0 : i32
    %c0_i32_1 = arith.constant 0 : i32
    return %c0_i32, %c0_i32_0 : i32, i32
  }
  func.func @transform_3(%arg0: i32) -> (i32, i32) {
    %c0_i32 = arith.constant 0 : i32
    %c0_i32_0 = arith.constant 0 : i32
    %c0_i32_1 = arith.constant 0 : i32
    return %c0_i32, %c0_i32_0 : i32, i32
  }
  func.func @transform_4(%arg0: i32) -> (i32, i32) {
    %c0_i32 = arith.constant 0 : i32
    %c0_i32_0 = arith.constant 0 : i32
    %c0_i32_1 = arith.constant 0 : i32
    return %c0_i32, %c0_i32_0 : i32, i32
  }
  func.func @transform_5(%arg0: i32) -> (i32, i32) {
    %c0_i32 = arith.constant 0 : i32
    %c0_i32_0 = arith.constant 0 : i32
    %c0_i32_1 = arith.constant 0 : i32
    return %c0_i32, %c0_i32_0 : i32, i32
  }
  func.func @transform_6(%arg0: i32) -> (i32, i32) {
    %c0_i32 = arith.constant 0 : i32
    %c0_i32_0 = arith.constant 0 : i32
    %c0_i32_1 = arith.constant 0 : i32
    return %c0_i32, %c0_i32_0 : i32, i32
  }
  func.func @transform_7(%arg0: i32) -> (i32, i32) {
    %c0_i32 = arith.constant 0 : i32
    %c0_i32_0 = arith.constant 0 : i32
    %c0_i32_1 = arith.constant 0 : i32
    return %c0_i32, %c0_i32_0 : i32, i32
  }
  func.func @transform_8(%arg0: i32) -> (i32, i32) {
    %c0_i32 = arith.constant 0 : i32
    %c0_i32_0 = arith.constant 0 : i32
    %c0_i32_1 = arith.constant 0 : i32
    return %c0_i32, %c0_i32_0 : i32, i32
  }
  func.func @transform_9(%arg0: i32) -> (i32, i32) {
    %c0_i32 = arith.constant 0 : i32
    %c0_i32_0 = arith.constant 0 : i32
    return %arg0, %c0_i32 : i32, i32
  }
  func.func @transform_10(%arg0: i32) -> (i32, i32) {
    %c0_i32 = arith.constant 0 : i32
    %c0_i32_0 = arith.constant 0 : i32
    return %arg0, %c0_i32 : i32, i32
  }
}

</mosaic_0001>

<llo_original>
// kernel: tpu_custom_call.1
$region0: #{tpu_custom_call.1}
  #allocation0 [shape = 'u32[]', space=smem, size = 0x4, offset = 0x4, fixed_abs, tag = 'smem constant byte address 0x4 - core index']
  #allocation1 [shape = 'u32[144,128]{1,0:T(1,128)}', space=vmem, size = 0x12000, scoped, tag = 'internal scratch']
  %s0 = inlined_call_operand.hbm [shape: bf16[16,32], index: 0, kind: input, shape index: {}]
  %s1 = inlined_call_operand.hbm [shape: bf16[32,128], index: 1, kind: input, shape index: {}]
  %s2 = inlined_call_operand.vmem [shape: f32[1,128], index: 2, kind: input, shape index: {}]
  %s3 = inlined_call_operand.hbm [shape: bf16[128,128], index: 3, kind: input, shape index: {}]
  %s4 = inlined_call_operand.vmem [shape: f32[1,128], index: 4, kind: input, shape index: {}]
  %s5 = inlined_call_operand.hbm [shape: bf16[128,128], index: 5, kind: input, shape index: {}]
  %s6 = inlined_call_operand.vmem [shape: f32[1,128], index: 6, kind: input, shape index: {}]
  %s7 = inlined_call_operand.vmem [shape: f32[1,128], index: 7, kind: input, shape index: {}]
  %s8 = inlined_call_operand.vmem [shape: f32[1,128], index: 8, kind: input, shape index: {}]
  %s9 = inlined_call_operand.hbm [shape: f32[16,128], index: 9, kind: output, shape index: {0}]
  %s10 = inlined_call_operand.vmem [shape: f32[16,1], index: 10, kind: output, shape index: {1}]
  %11 = xla_tuple %s9, %s10
  %s12 = sld [smem:[#allocation0]]
  $region70: #{tpu_custom_call.1} parent=0
    _
  %s14 = ssub.s32 1, %s12
  %s15 = scalar_select 0, %s14, %s12
  $region1: #{tpu_custom_call.1} parent=0
    #allocation2 [shape = 'u8[4096]{0}', space=vmem, size = 0x1000, scoped, tag = 'input window, operand 0, single buffered']
    #allocation3 [shape = 's32[1]{0}', space=sflag, size = 0x4, scoped, tag = 'scoped memory for tpu_custom_call.1']
    #allocation4 [shape = 's32[1]{0}', space=sflag, size = 0x4, scoped, tag = 'scoped memory for tpu_custom_call.1']
    #allocation5 [shape = 'u8[8192]{0}', space=vmem, size = 0x2000, scoped, tag = 'input window, operand 1, single buffered']
    #allocation6 [shape = 's32[1]{0}', space=sflag, size = 0x4, scoped, tag = 'scoped memory for tpu_custom_call.1']
    #allocation7 [shape = 'u8[32768]{0}', space=vmem, size = 0x8000, scoped, tag = 'input window, operand 3, single buffered']
    #allocation8 [shape = 'u8[32768]{0}', space=vmem, size = 0x8000, scoped, tag = 'input window, operand 5, single buffered']
    #allocation9 [shape = 's32[1]{0}', space=sflag, size = 0x4, scoped, tag = 'scoped memory for tpu_custom_call.1']
    #allocation10 [shape = 'u8[8192]{0}', space=vmem, size = 0x2000, scoped, tag = 'output window, operand 0, single buffered']
    %16 = vsyncpa [#allocation3], 0
    %17 = vsyncpa [#allocation6], 0
    %18 = vsyncpa [#allocation9], 0
    %19 = vsyncpa [#allocation4], 0
    // Predicated region
    $region2: #{tpu_custom_call.1} parent=1 // pred_check
      _
    $region3: #{tpu_custom_call.1} parent=1 // pred_check_branch
      %21 = sbr.rel (0) target = $region5
    $region4: #{tpu_custom_call.1} parent=1 // pred_region
      %s23 = ssub.s32 128, 128
      %24 = vsyncadd [#allocation3], %s23
      %s25 = sshll.u32 [#allocation2], 4
      %s26 = int_to_ptr.vmem [resolvable:$true] %s25
      %31 = dma.hbm_to_vmem [thread:$0]  %s0, 128, %s26, [#allocation3], 64, 64, 4
    $region5: #{tpu_custom_call.1} parent=1 // pred_fallthru
      _
    // Predicated region
    $region6: #{tpu_custom_call.1} parent=1 // pred_check
      _
    $region7: #{tpu_custom_call.1} parent=1 // pred_check_branch
      %33 = sbr.rel (0) target = $region9
    $region8: #{tpu_custom_call.1} parent=1 // pred_region
      %s35 = ssub.s32 256, 256
      %36 = vsyncadd [#allocation6], %s35
      %s37 = sshll.u32 [#allocation5], 4
      %s38 = int_to_ptr.vmem [resolvable:$true] %s37
      %43 = dma.hbm_to_vmem [thread:$0]  %s1, 256, %s38, [#allocation6], 64, 64, 4
    $region9: #{tpu_custom_call.1} parent=1 // pred_fallthru
      _
    // Predicated region
    $region10: #{tpu_custom_call.1} parent=1 // pred_check
      _
    $region11: #{tpu_custom_call.1} parent=1 // pred_check_branch
      %45 = sbr.rel (0) target = $region13
    $region12: #{tpu_custom_call.1} parent=1 // pred_region
      _
    $region13: #{tpu_custom_call.1} parent=1 // pred_fallthru
      _
    // Predicated region
    $region14: #{tpu_custom_call.1} parent=1 // pred_check
      _
    $region15: #{tpu_custom_call.1} parent=1 // pred_check_branch
      %47 = sbr.rel (0) target = $region17
    $region16: #{tpu_custom_call.1} parent=1 // pred_region
      %s49 = ssub.s32 1024, 1024
      %50 = vsyncadd [#allocation6], %s49
      %s51 = sshll.u32 [#allocation7], 4
      %s52 = int_to_ptr.vmem [resolvable:$true] %s51
      %57 = dma.hbm_to_vmem [thread:$0]  %s3, 1024, %s52, [#allocation6], 64, 64, 4
    $region17: #{tpu_custom_call.1} parent=1 // pred_fallthru
      _
    // Predicated region
    $region18: #{tpu_custom_call.1} parent=1 // pred_check
      _
    $region19: #{tpu_custom_call.1} parent=1 // pred_check_branch
      %59 = sbr.rel (0) target = $region21
    $region20: #{tpu_custom_call.1} parent=1 // pred_region
      _
    $region21: #{tpu_custom_call.1} parent=1 // pred_fallthru
      _
    // Predicated region
    $region22: #{tpu_custom_call.1} parent=1 // pred_check
      _
    $region23: #{tpu_custom_call.1} parent=1 // pred_check_branch
      %61 = sbr.rel (0) target = $region25
    $region24: #{tpu_custom_call.1} parent=1 // pred_region
      %s63 = ssub.s32 1024, 1024
      %64 = vsyncadd [#allocation9], %s63
      %s65 = sshll.u32 [#allocation8], 4
      %s66 = int_to_ptr.vmem [resolvable:$true] %s65
      %71 = dma.hbm_to_vmem [thread:$0]  %s5, 1024, %s66, [#allocation9], 64, 64, 4
    $region25: #{tpu_custom_call.1} parent=1 // pred_fallthru
      _
    // Predicated region
    $region26: #{tpu_custom_call.1} parent=1 // pred_check
      _
    $region27: #{tpu_custom_call.1} parent=1 // pred_check_branch
      %73 = sbr.rel (0) target = $region29
    $region28: #{tpu_custom_call.1} parent=1 // pred_region
      _
    $region29: #{tpu_custom_call.1} parent=1 // pred_fallthru
      _
    // Predicated region
    $region30: #{tpu_custom_call.1} parent=1 // pred_check
      _
    $region31: #{tpu_custom_call.1} parent=1 // pred_check_branch
      %75 = sbr.rel (0) target = $region33
    $region32: #{tpu_custom_call.1} parent=1 // pred_region
      _
    $region33: #{tpu_custom_call.1} parent=1 // pred_fallthru
      _
    // Predicated region
    $region34: #{tpu_custom_call.1} parent=1 // pred_check
      _
    $region35: #{tpu_custom_call.1} parent=1 // pred_check_branch
      %77 = sbr.rel (0) target = $region37
    $region36: #{tpu_custom_call.1} parent=1 // pred_region
      _
    $region37: #{tpu_custom_call.1} parent=1 // pred_fallthru
      _
    // Predicated region
    $region38: #{tpu_custom_call.1} parent=1 // pred_check
      _
    $region39: #{tpu_custom_call.1} parent=1 // pred_check_branch
      %79 = sbr.rel (0) target = $region41
    $region40: #{tpu_custom_call.1} parent=1 // pred_region
      %80 = dma.done [#allocation3], 128
    $region41: #{tpu_custom_call.1} parent=1 // pred_fallthru
      _
    // Predicated region
    $region42: #{tpu_custom_call.1} parent=1 // pred_check
      _
    $region43: #{tpu_custom_call.1} parent=1 // pred_check_branch
      %82 = sbr.rel (0) target = $region45
    $region44: #{tpu_custom_call.1} parent=1 // pred_region
      %83 = dma.done [#allocation6], 256
    $region45: #{tpu_custom_call.1} parent=1 // pred_fallthru
      _
    // Predicated region
    $region46: #{tpu_custom_call.1} parent=1 // pred_check
      _
    $region47: #{tpu_custom_call.1} parent=1 // pred_check_branch
      %85 = sbr.rel (0) target = $region49
    $region48: #{tpu_custom_call.1} parent=1 // pred_region
      %86 = dma.done [#allocation6], 1024
    $region49: #{tpu_custom_call.1} parent=1 // pred_fallthru
      _
    // Predicated region
    $region50: #{tpu_custom_call.1} parent=1 // pred_check
      _
    $region51: #{tpu_custom_call.1} parent=1 // pred_check_branch
      %88 = sbr.rel (0) target = $region53
    $region52: #{tpu_custom_call.1} parent=1 // pred_region
      %89 = dma.done [#allocation9], 1024
    $region53: #{tpu_custom_call.1} parent=1 // pred_fallthru
      _
    %v91 = vld [vmem:[#allocation2] sm:$0xf]
    %v92 = vld [vmem:[#allocation2 + $0x4] sm:$0xf]
    %v93 = vunpack.c.l.bf16 %v91
    %v94 = vunpack.c.l.bf16 %v92
    %vm95 = vcmask 261120
    %v96 = vsel %vm95, %v93, 0.0
    %97 = vadd.xlane.f32.xlu0 %v96
    %v98 = vpop.xlane.xlu0 %97
    %v99 = vsel %vm95, %v94, 0.0
    %100 = vadd.xlane.f32.xlu0 %v99
    %v101 = vpop.xlane.xlu0 %100
    %v102 = vrcp.pop 32.0
    %v103 = vmul.f32 %v98, %v102
    %v104 = vmul.f32 %v101, %v102
    %v105 = vsub.f32 %v93, %v103
    %v106 = vsub.f32 %v94, %v104
    %v107 = vmul.f32 %v105, %v105
    %v108 = vmul.f32 %v106, %v106
    %v109 = vsel %vm95, %v107, 0.0
    %110 = vadd.xlane.f32.xlu0 %v109
    %v111 = vpop.xlane.xlu0 %110
    %v112 = vsel %vm95, %v108, 0.0
    %113 = vadd.xlane.f32.xlu0 %v112
    %v114 = vpop.xlane.xlu0 %113
    %v115 = vmul.f32 %v111, %v102
    %v116 = vmul.f32 %v114, %v102
    %v117 = vadd.f32 %v115, 1e-05
    %v118 = vadd.f32 %v116, 1e-05
    %v119 = vrsqrt.pop %v117
    %v120 = vrsqrt.pop %v118
    %v121 = vmul.f32 %v105, %v119
    %v122 = vmul.f32 %v106, %v120
    %v123 = vpack.c.bf16 %v122, %v121
    %v124 = vld [vmem:[#allocation5] sm:$0xf]
    %v125 = vld [vmem:[#allocation5 + $0x4] sm:$0xf]
    %v126 = vld [vmem:[#allocation5 + $0x8] sm:$0xf]
    %v127 = vld [vmem:[#allocation5 + $0xc] sm:$0xf]
    %v128 = vld [vmem:[%s2] sm:$0x1]
    %v130 = vlaneseq
    %v131 = vshrl.u32 %v130, 7
    %v132 = vsub.s32 0, %v131
    %v133 = vrot.slane %v128, %v132
    %v139 = vunpack.c.l.b16 %v124
    %v140 = vunpack.c.l.b16 %v125
    %v141 = vunpack.c.l.b16 %v126
    %v142 = vunpack.c.l.b16 %v127
    %v143 = vpack.c.b16 %v140, %v139
    %v144 = vpack.c.b16 %v142, %v141
    %v148 = vsel %vm95, %v123, 0
    %150 = vmatprep.subr.bf16.mxu0 0
    %151 = vmatpush1.bf16.msra.mxu0 %v143
    %152 = vmatprep.subr.bf16.mxu0 0
    %153 = vmatpush1.bf16.msra.mxu0 %v144
    %154 = vmatprep.subr.bf16.mxu0 0
    %155 = vmatpush1.bf16.msra.mxu0 0
    %156 = vmatprep.subr.bf16.mxu0 0
    %157 = vmatpush1.bf16.msra.mxu0 0
    %158 = vmatprep.subr.bf16.mxu0 0
    %159 = vmatpush1.bf16.msra.mxu0 0
    %160 = vmatprep.subr.bf16.mxu0 0
    %161 = vmatpush1.bf16.msra.mxu0 0
    %162 = vmatprep.subr.bf16.mxu0 0
    %163 = vmatpush1.bf16.msra.mxu0 0
    %164 = vmatprep.subr.bf16.mxu0 0
    %165 = vmatpush1.bf16.msra.mxu0 0
    %166 = vmatprep.subr.bf16.mxu0 0
    %167 = vmatpush1.bf16.msra.mxu0 0
    %168 = vmatprep.subr.bf16.mxu0 0
    %169 = vmatpush1.bf16.msra.mxu0 0
    %170 = vmatprep.subr.bf16.mxu0 0
    %171 = vmatpush1.bf16.msra.mxu0 0
    %172 = vmatprep.subr.bf16.mxu0 0
    %173 = vmatpush1.bf16.msra.mxu0 0
    %174 = vmatprep.subr.bf16.mxu0 0
    %175 = vmatpush1.bf16.msra.mxu0 0
    %176 = vmatprep.subr.bf16.mxu0 0
    %177 = vmatpush1.bf16.msra.mxu0 0
    %178 = vmatprep.subr.bf16.mxu0 0
    %179 = vmatpush1.bf16.msra.mxu0 0
    %180 = vmatprep.subr.bf16.mxu0 0
    %181 = vmatpush1.bf16.msra.mxu0 0
    %182 = vmatprep.mubr.bf16.mxu0 0
    %183 = vmatmul.mubr.bf16.gmra.mrb[0].mxu0 %v148
    %v184 = vpop.f32.mrb[0].mxu0
    %v185 = vadd.f32 %v133, %v184
    %v186 = vpop.f32.mrb[0].mxu0
    %v187 = vpop.f32.mrb[0].mxu0
    %v188 = vadd.f32 %v133, %v187
    %v189 = vpop.f32.mrb[0].mxu0
    %190 = vdwg.mxu0
    %v191 = vmul.f32 %v185, 0.5
    %v192 = vmul.f32 %v188, 0.5
    %v193 = vmul.f32 %v185, 0.70710677
    %v194 = vmul.f32 %v188, 0.70710677
    %vm195 = vcmp.lt.f32.partialorder %v193, 0.0
    %vm196 = vcmp.lt.f32.partialorder %v194, 0.0
    %v197 = vsel %vm195, -1.0, 1.0
    %v198 = vsel %vm196, -1.0, 1.0
    %v199 = vand.u32 2147483647, %v193
    %v200 = vand.u32 2147483647, %v194
    %v201 = vmul.f32 %v199, 0.3275911
    %v202 = vmul.f32 %v200, 0.3275911
    %v203 = vadd.f32 %v201, 1.0
    %v204 = vadd.f32 %v202, 1.0
    %v205 = vrcp.pop %v203
    %v206 = vmul.f32 1.0, %v205
    %v207 = vrcp.pop %v204
    %v208 = vmul.f32 1.0, %v207
    %v209 = vmul.f32 %v206, 1.0614054
    %v210 = vmul.f32 %v208, 1.0614054
    %v211 = vadd.f32 %v209, -1.4531521
    %v212 = vadd.f32 %v210, -1.4531521
    %v213 = vmul.f32 %v211, %v206
    %v214 = vmul.f32 %v212, %v208
    %v215 = vadd.f32 %v213, 1.4214138
    %v216 = vadd.f32 %v214, 1.4214138
    %v217 = vmul.f32 %v215, %v206
    %v218 = vmul.f32 %v216, %v208
    %v219 = vadd.f32 %v217, -0.28449672
    %v220 = vadd.f32 %v218, -0.28449672
    %v221 = vmul.f32 %v219, %v206
    %v222 = vmul.f32 %v220, %v208
    %v223 = vadd.f32 %v221, 0.2548296
    %v224 = vadd.f32 %v222, 0.2548296
    %v225 = vmul.f32 %v223, %v206
    %v226 = vmul.f32 %v224, %v208
    %v227 = vsub.f32 0.0, %v199
    %v228 = vsub.f32 0.0, %v200
    %v229 = vmul.f32 %v227, %v199
    %v230 = vmul.f32 %v228, %v200
    %v231 = vmul.f32 %v229, 1.442695
    %v232 = vpow.pop %v231
    %v233 = vmul.f32 %v230, 1.442695
    %v234 = vpow.pop %v233
    %v235 = vmul.f32 %v225, %v232
    %v236 = vmul.f32 %v226, %v234
    %v237 = vsub.f32 1.0, %v235
    %v238 = vsub.f32 1.0, %v236
    %v239 = vmul.f32 %v197, %v237
    %v240 = vmul.f32 %v198, %v238
    %v241 = vadd.f32 %v239, 1.0
    %v242 = vadd.f32 %v240, 1.0
    %v243 = vmul.f32 %v191, %v241
    %v244 = vmul.f32 %v192, %v242
    %v245 = vpack.c.bf16 %v244, %v243
    %v246 = vld [vmem:[#allocation7] sm:$0xf]
    %v247 = vld [vmem:[#allocation7 + $0x4] sm:$0xf]
    %v248 = vld [vmem:[#allocation7 + $0x8] sm:$0xf]
    %v249 = vld [vmem:[#allocation7 + $0xc] sm:$0xf]
    %v250 = vld [vmem:[#allocation7 + $0x10] sm:$0xf]
    %v251 = vld [vmem:[#allocation7 + $0x14] sm:$0xf]
    %v252 = vld [vmem:[#allocation7 + $0x18] sm:$0xf]
    %v253 = vld [vmem:[#allocation7 + $0x1c] sm:$0xf]
    %v254 = vld [vmem:[#allocation7 + $0x20] sm:$0xf]
    %v255 = vld [vmem:[#allocation7 + $0x24] sm:$0xf]
    %v256 = vld [vmem:[#allocation7 + $0x28] sm:$0xf]
    %v257 = vld [vmem:[#allocation7 + $0x2c] sm:$0xf]
    %v258 = vld [vmem:[#allocation7 + $0x30] sm:$0xf]
    %v259 = vld [vmem:[#allocation7 + $0x34] sm:$0xf]
    %v260 = vld [vmem:[#allocation7 + $0x38] sm:$0xf]
    %v261 = vld [vmem:[#allocation7 + $0x3c] sm:$0xf]
    %v262 = vld [vmem:[%s4] sm:$0x1]
    %v264 = vlaneseq
    %v265 = vshrl.u32 %v264, 7
    %v266 = vsub.s32 0, %v265
    %v267 = vrot.slane %v262, %v266
    %v285 = vunpack.c.l.b16 %v246
    %v286 = vunpack.c.l.b16 %v247
    %v287 = vunpack.c.l.b16 %v248
    %v288 = vunpack.c.l.b16 %v249
    %v289 = vunpack.c.l.b16 %v250
    %v290 = vunpack.c.l.b16 %v251
    %v291 = vunpack.c.l.b16 %v252
    %v292 = vunpack.c.l.b16 %v253
    %v293 = vunpack.c.l.b16 %v254
    %v294 = vunpack.c.l.b16 %v255
    %v295 = vunpack.c.l.b16 %v256
    %v296 = vunpack.c.l.b16 %v257
    %v297 = vunpack.c.l.b16 %v258
    %v298 = vunpack.c.l.b16 %v259
    %v299 = vunpack.c.l.b16 %v260
    %v300 = vunpack.c.l.b16 %v261
    %v301 = vpack.c.b16 %v286, %v285
    %v302 = vpack.c.b16 %v288, %v287
    %v303 = vpack.c.b16 %v290, %v289
    %v304 = vpack.c.b16 %v292, %v291
    %v305 = vpack.c.b16 %v294, %v293
    %v306 = vpack.c.b16 %v296, %v295
    %v307 = vpack.c.b16 %v298, %v297
    %v308 = vpack.c.b16 %v300, %v299
    %317 = vmatprep.subr.bf16.mxu0 0
    %318 = vmatpush1.bf16.msra.mxu0 %v301
    %319 = vmatprep.subr.bf16.mxu0 0
    %320 = vmatpush1.bf16.msra.mxu0 %v302
    %321 = vmatprep.subr.bf16.mxu0 0
    %322 = vmatpush1.bf16.msra.mxu0 %v303
    %323 = vmatprep.subr.bf16.mxu0 0
    %324 = vmatpush1.bf16.msra.mxu0 %v304
    %325 = vmatprep.subr.bf16.mxu0 0
    %326 = vmatpush1.bf16.msra.mxu0 %v305
    %327 = vmatprep.subr.bf16.mxu0 0
    %328 = vmatpush1.bf16.msra.mxu0 %v306
    %329 = vmatprep.subr.bf16.mxu0 0
    %330 = vmatpush1.bf16.msra.mxu0 %v307
    %331 = vmatprep.subr.bf16.mxu0 0
    %332 = vmatpush1.bf16.msra.mxu0 %v308
    %333 = vmatprep.subr.bf16.mxu0 0
    %334 = vmatpush1.bf16.msra.mxu0 0
    %335 = vmatprep.subr.bf16.mxu0 0
    %336 = vmatpush1.bf16.msra.mxu0 0
    %337 = vmatprep.subr.bf16.mxu0 0
    %338 = vmatpush1.bf16.msra.mxu0 0
    %339 = vmatprep.subr.bf16.mxu0 0
    %340 = vmatpush1.bf16.msra.mxu0 0
    %341 = vmatprep.subr.bf16.mxu0 0
    %342 = vmatpush1.bf16.msra.mxu0 0
    %343 = vmatprep.subr.bf16.mxu0 0
    %344 = vmatpush1.bf16.msra.mxu0 0
    %345 = vmatprep.subr.bf16.mxu0 0
    %346 = vmatpush1.bf16.msra.mxu0 0
    %347 = vmatprep.subr.bf16.mxu0 0
    %348 = vmatpush1.bf16.msra.mxu0 0
    %349 = vmatprep.mubr.bf16.mxu0 0
    %350 = vmatmul.mubr.bf16.gmra.mrb[0].mxu0 %v245
    %v351 = vpop.f32.mrb[0].mxu0
    %v352 = vadd.f32 %v267, %v351
    %v353 = vpop.f32.mrb[0].mxu0
    %v354 = vpop.f32.mrb[0].mxu0
    %v355 = vadd.f32 %v267, %v354
    %v356 = vpop.f32.mrb[0].mxu0
    %357 = vdwg.mxu0
    %v358 = vmul.f32 %v352, 0.5
    %v359 = vmul.f32 %v355, 0.5
    %v360 = vmul.f32 %v352, 0.70710677
    %v361 = vmul.f32 %v355, 0.70710677
    %vm362 = vcmp.lt.f32.partialorder %v360, 0.0
    %vm363 = vcmp.lt.f32.partialorder %v361, 0.0
    %v364 = vsel %vm362, -1.0, 1.0
    %v365 = vsel %vm363, -1.0, 1.0
    %v366 = vand.u32 2147483647, %v360
    %v367 = vand.u32 2147483647, %v361
    %v368 = vmul.f32 %v366, 0.3275911
    %v369 = vmul.f32 %v367, 0.3275911
    %v370 = vadd.f32 %v368, 1.0
    %v371 = vadd.f32 %v369, 1.0
    %v372 = vrcp.pop %v370
    %v373 = vmul.f32 1.0, %v372
    %v374 = vrcp.pop %v371
    %v375 = vmul.f32 1.0, %v374
    %v376 = vmul.f32 %v373, 1.0614054
    %v377 = vmul.f32 %v375, 1.0614054
    %v378 = vadd.f32 %v376, -1.4531521
    %v379 = vadd.f32 %v377, -1.4531521
    %v380 = vmul.f32 %v378, %v373
    %v381 = vmul.f32 %v379, %v375
    %v382 = vadd.f32 %v380, 1.4214138
    %v383 = vadd.f32 %v381, 1.4214138
    %v384 = vmul.f32 %v382, %v373
    %v385 = vmul.f32 %v383, %v375
    %v386 = vadd.f32 %v384, -0.28449672
    %v387 = vadd.f32 %v385, -0.28449672
    %v388 = vmul.f32 %v386, %v373
    %v389 = vmul.f32 %v387, %v375
    %v390 = vadd.f32 %v388, 0.2548296
    %v391 = vadd.f32 %v389, 0.2548296
    %v392 = vmul.f32 %v390, %v373
    %v393 = vmul.f32 %v391, %v375
    %v394 = vsub.f32 0.0, %v366
    %v395 = vsub.f32 0.0, %v367
    %v396 = vmul.f32 %v394, %v366
    %v397 = vmul.f32 %v395, %v367
    %v398 = vmul.f32 %v396, 1.442695
    %v399 = vpow.pop %v398
    %v400 = vmul.f32 %v397, 1.442695
    %v401 = vpow.pop %v400
    %v402 = vmul.f32 %v392, %v399
    %v403 = vmul.f32 %v393, %v401
    %v404 = vsub.f32 1.0, %v402
    %v405 = vsub.f32 1.0, %v403
    %v406 = vmul.f32 %v364, %v404
    %v407 = vmul.f32 %v365, %v405
    %v408 = vadd.f32 %v406, 1.0
    %v409 = vadd.f32 %v407, 1.0
    %v410 = vmul.f32 %v358, %v408
    %v411 = vmul.f32 %v359, %v409
    %v412 = vpack.c.bf16 %v411, %v410
    %v413 = vld [vmem:[#allocation8] sm:$0xf]
    %v414 = vld [vmem:[#allocation8 + $0x4] sm:$0xf]
    %v415 = vld [vmem:[#allocation8 + $0x8] sm:$0xf]
    %v416 = vld [vmem:[#allocation8 + $0xc] sm:$0xf]
    %v417 = vld [vmem:[#allocation8 + $0x10] sm:$0xf]
    %v418 = vld [vmem:[#allocation8 + $0x14] sm:$0xf]
    %v419 = vld [vmem:[#allocation8 + $0x18] sm:$0xf]
    %v420 = vld [vmem:[#allocation8 + $0x1c] sm:$0xf]
    %v421 = vld [vmem:[#allocation8 + $0x20] sm:$0xf]
    %v422 = vld [vmem:[#allocation8 + $0x24] sm:$0xf]
    %v423 = vld [vmem:[#allocation8 + $0x28] sm:$0xf]
    %v424 = vld [vmem:[#allocation8 + $0x2c] sm:$0xf]
    %v425 = vld [vmem:[#allocation8 + $0x30] sm:$0xf]
    %v426 = vld [vmem:[#allocation8 + $0x34] sm:$0xf]
    %v427 = vld [vmem:[#allocation8 + $0x38] sm:$0xf]
    %v428 = vld [vmem:[#allocation8 + $0x3c] sm:$0xf]
    %v429 = vld [vmem:[%s6] sm:$0x1]
    %v431 = vlaneseq
    %v432 = vshrl.u32 %v431, 7
    %v433 = vsub.s32 0, %v432
    %v434 = vrot.slane %v429, %v433
    %v452 = vunpack.c.l.b16 %v413
    %v453 = vunpack.c.l.b16 %v414
    %v454 = vunpack.c.l.b16 %v415
    %v455 = vunpack.c.l.b16 %v416
    %v456 = vunpack.c.l.b16 %v417
    %v457 = vunpack.c.l.b16 %v418
    %v458 = vunpack.c.l.b16 %v419
    %v459 = vunpack.c.l.b16 %v420
    %v460 = vunpack.c.l.b16 %v421
    %v461 = vunpack.c.l.b16 %v422
    %v462 = vunpack.c.l.b16 %v423
    %v463 = vunpack.c.l.b16 %v424
    %v464 = vunpack.c.l.b16 %v425
    %v465 = vunpack.c.l.b16 %v426
    %v466 = vunpack.c.l.b16 %v427
    %v467 = vunpack.c.l.b16 %v428
    %v468 = vpack.c.b16 %v453, %v452
    %v469 = vpack.c.b16 %v455, %v454
    %v470 = vpack.c.b16 %v457, %v456
    %v471 = vpack.c.b16 %v459, %v458
    %v472 = vpack.c.b16 %v461, %v460
    %v473 = vpack.c.b16 %v463, %v462
    %v474 = vpack.c.b16 %v465, %v464
    %v475 = vpack.c.b16 %v467, %v466
    %484 = vmatprep.subr.bf16.mxu0 0
    %485 = vmatpush1.bf16.msra.mxu0 %v468
    %486 = vmatprep.subr.bf16.mxu0 0
    %487 = vmatpush1.bf16.msra.mxu0 %v469
    %488 = vmatprep.subr.bf16.mxu0 0
    %489 = vmatpush1.bf16.msra.mxu0 %v470
    %490 = vmatprep.subr.bf16.mxu0 0
    %491 = vmatpush1.bf16.msra.mxu0 %v471
    %492 = vmatprep.subr.bf16.mxu0 0
    %493 = vmatpush1.bf16.msra.mxu0 %v472
    %494 = vmatprep.subr.bf16.mxu0 0
    %495 = vmatpush1.bf16.msra.mxu0 %v473
    %496 = vmatprep.subr.bf16.mxu0 0
    %497 = vmatpush1.bf16.msra.mxu0 %v474
    %498 = vmatprep.subr.bf16.mxu0 0
    %499 = vmatpush1.bf16.msra.mxu0 %v475
    %500 = vmatprep.subr.bf16.mxu0 0
    %501 = vmatpush1.bf16.msra.mxu0 0
    %502 = vmatprep.subr.bf16.mxu0 0
    %503 = vmatpush1.bf16.msra.mxu0 0
    %504 = vmatprep.subr.bf16.mxu0 0
    %505 = vmatpush1.bf16.msra.mxu0 0
    %506 = vmatprep.subr.bf16.mxu0 0
    %507 = vmatpush1.bf16.msra.mxu0 0
    %508 = vmatprep.subr.bf16.mxu0 0
    %509 = vmatpush1.bf16.msra.mxu0 0
    %510 = vmatprep.subr.bf16.mxu0 0
    %511 = vmatpush1.bf16.msra.mxu0 0
    %512 = vmatprep.subr.bf16.mxu0 0
    %513 = vmatpush1.bf16.msra.mxu0 0
    %514 = vmatprep.subr.bf16.mxu0 0
    %515 = vmatpush1.bf16.msra.mxu0 0
    %516 = vmatprep.mubr.bf16.mxu0 0
    %517 = vmatmul.mubr.bf16.gmra.mrb[0].mxu0 %v412
    %v518 = vpop.f32.mrb[0].mxu0
    %v519 = vadd.f32 %v434, %v518
    %v520 = vpop.f32.mrb[0].mxu0
    %v521 = vpop.f32.mrb[0].mxu0
    %v522 = vadd.f32 %v434, %v521
    %v523 = vpop.f32.mrb[0].mxu0
    %524 = vdwg.mxu0
    %525 = vst [vmem:[#allocation10] sm:$0xff] %v519
    %526 = vst [vmem:[#allocation10 + $0x8] sm:$0xff] %v522
    %v527 = vld [vmem:[%s7] sm:$0x1]
    %v529 = vlaneseq
    %v530 = vshrl.u32 %v529, 7
    %v531 = vsub.s32 0, %v530
    %v532 = vrot.slane %v527, %v531
    %v534 = vadd.f32 %v519, %v532
    %v535 = vadd.f32 %v522, %v532
    %536 = vmax.xlane.f32.xlu0 %v534
    %v537 = vpop.xlane.xlu0 %536
    %538 = vmax.xlane.f32.xlu0 %v535
    %v539 = vpop.xlane.xlu0 %538
    %v540 = vsub.f32 %v534, %v537
    %v541 = vsub.f32 %v535, %v539
    %v542 = vmul.f32 %v540, 1.442695
    %v543 = vpow.pop %v542
    %v544 = vmul.f32 %v541, 1.442695
    %v545 = vpow.pop %v544
    %546 = vadd.xlane.f32.xlu0 %v543
    %v547 = vpop.xlane.xlu0 %546
    %548 = vadd.xlane.f32.xlu0 %v545
    %v549 = vpop.xlane.xlu0 %548
    %v550 = vrcp.pop %v547
    %v551 = vrcp.pop %v549
    %v552 = vmul.f32 %v543, %v550
    %v553 = vmul.f32 %v545, %v551
    %v554 = vld [vmem:[%s8] sm:$0x1]
    %v556 = vlaneseq
    %v557 = vshrl.u32 %v556, 7
    %v558 = vsub.s32 0, %v557
    %v559 = vrot.slane %v554, %v558
    %v561 = vmul.f32 %v552, %v559
    %v562 = vmul.f32 %v553, %v559
    %563 = vadd.xlane.f32.xlu0 %v561
    %v564 = vpop.xlane.xlu0 %563
    %565 = vadd.xlane.f32.xlu0 %v562
    %v566 = vpop.xlane.xlu0 %565
    %v567 = vmul.f32 %v564, 100.0
    %v568 = vmul.f32 %v566, 100.0
    %vm569 = vcmask 7168
    %570 = vst.msk [vmem:[%s10] sm:$0xff] %vm569, %v567
    %571 = vst.msk [vmem:[%s10 + $0x8] sm:$0xff] %vm569, %v568
    // Predicated region
    $region54: #{tpu_custom_call.1} parent=1 // pred_check
      _
    $region55: #{tpu_custom_call.1} parent=1 // pred_check_branch
      %573 = sbr.rel (0) target = $region57
    $region56: #{tpu_custom_call.1} parent=1 // pred_region
      %s575 = ssub.s32 256, 256
      %576 = vsyncadd [#allocation4], %s575
      %s577 = sshll.u32 [#allocation10], 4
      %s578 = int_to_ptr.vmem [resolvable:$true] %s577
      %583 = dma.vmem_to_hbm [thread:$0]  %s578, 256, %s9, [#allocation4], 128, 128, 8
    $region57: #{tpu_custom_call.1} parent=1 // pred_fallthru
      _
    // Predicated region
    $region58: #{tpu_custom_call.1} parent=1 // pred_check
      _
    $region59: #{tpu_custom_call.1} parent=1 // pred_check_branch
      %585 = sbr.rel (0) target = $region61
    $region60: #{tpu_custom_call.1} parent=1 // pred_region
      _
    $region61: #{tpu_custom_call.1} parent=1 // pred_fallthru
      _
    // Predicated region
    $region62: #{tpu_custom_call.1} parent=1 // pred_check
      _
    $region63: #{tpu_custom_call.1} parent=1 // pred_check_branch
      %587 = sbr.rel (0) target = $region65
    $region64: #{tpu_custom_call.1} parent=1 // pred_region
      %588 = dma.done [#allocation4], 256
    $region65: #{tpu_custom_call.1} parent=1 // pred_fallthru
      _
    // Predicated region
    $region66: #{tpu_custom_call.1} parent=1 // pred_check
      _
    $region67: #{tpu_custom_call.1} parent=1 // pred_check_branch
      %590 = sbr.rel (0) target = $region69
    $region68: #{tpu_custom_call.1} parent=1 // pred_region
      _
    $region69: #{tpu_custom_call.1} parent=1 // pred_fallthru
      _
    %591 = vsyncpa [#allocation3], 1
    %592 = vsyncpa [#allocation6], 1
    %593 = vsyncpa [#allocation9], 1
    %594 = vsyncpa [#allocation4], 1

</llo_original>
